<compile_context>
chip_gen: v7x
topology: tpu7x:2x2x1
jax: 0.10.0
libtpu: 0.0.40
codegen_flags: <defaults>
</compile_context>

<pallas_src>
import functools

import jax
import jax.numpy as jnp
from jax.experimental import pallas as pl
from jax.experimental.pallas import tpu as pltpu


def _energy_partial_kernel(x_ref, out_ref, *, energy_type, last_valid):
    """One grid step: lane-dense (1, W) partial energy sum over a (B, H, W) block.

    The integrand is computed unmasked on the full vreg-aligned tile using
    circular rolls (wrapped border rows/cols are masked out after the batch
    reduction); constant difference scales are folded into the wrapper epilogue.
    """
    x = x_ref[...]                       # native dtype; cast AFTER the rolls
    b, h, w = x.shape
    f32 = jnp.float32

    if last_valid is not None:
        # Ragged last block: zero the out-of-range batch slices with a select,
        # so unspecified values read from the padded HBM region cannot
        # propagate.  This branch is only compiled when raggedness occurs.
        pid = pl.program_id(0)
        valid = jnp.where(pid == pl.num_programs(0) - 1, last_valid, b)
        bidx = jax.lax.broadcasted_iota(jnp.int32, (b, h, w), 0)
        x = jnp.where(bidx < valid, x, jnp.zeros_like(x))

    def sh(a, k):   # out[:, i, :] = a[:, i + k, :]   (circular; borders masked later)
        return pltpu.roll(a, shift=(-k) % h, axis=1)

    def sw(a, k):   # out[:, :, j] = a[:, :, j + k]
        return pltpu.roll(a, shift=(-k) % w, axis=2)

    if energy_type in ("gradient-l2", "gradient-l1"):
        dx = sh(x, +1).astype(f32) - sh(x, -1).astype(f32)     # 2 * dT/dH
        dy = sw(x, +1).astype(f32) - sw(x, -1).astype(f32)     # 2 * dT/dW
        if energy_type == "gradient-l2":
            integrand = dx * dx + dy * dy
        else:
            integrand = jnp.abs(dx) + jnp.abs(dy)
        r0 = 1
    elif energy_type == "bending":
        xf = x.astype(f32)
        x2 = xf + xf
        # Second derivatives directly from +/-2 shifts of the (packed) input:
        # 8 rolls total (6 of them on the native tile) instead of 10.
        dxx = sh(x, +2).astype(f32) + sh(x, -2).astype(f32) - x2   # 4 * d2T/dH2
        dyy = sw(x, +2).astype(f32) + sw(x, -2).astype(f32) - x2   # 4 * d2T/dW2
        dx = sh(x, +1).astype(f32) - sh(x, -1).astype(f32)
        dxy = sw(dx, +1) - sw(dx, -1)                              # 4 * d2T/dHdW
        integrand = dxx * dxx + dyy * dyy + 2.0 * dxy * dxy
        r0 = 2
    else:
        raise Exception("Not recognised local regulariser!")

    # Batch reduction first (border mask is batch-invariant), then the separable
    # mask: rows on the (H, W) partial, cols on the final (1, W) row.
    hw_sum = jnp.sum(integrand, axis=0)                            # (H, W)
    row = jax.lax.broadcasted_iota(jnp.int32, (h, w), 0)
    hw_sum = jnp.where((row >= r0) & (row <= h - 1 - r0), hw_sum, 0.0)
    lane_sum = jnp.sum(hw_sum, axis=0, keepdims=True)              # (1, W)
    col = jax.lax.broadcasted_iota(jnp.int32, (1, w), 1)
    out_ref[0, :, :] = jnp.where((col >= r0) & (col <= w - 1 - r0), lane_sum, 0.0)


def _tpu_vmem_capacity_bytes():
    """Physical VMEM of the local chip; conservative fallback if unknown."""
    try:
        info = pltpu.get_tpu_info()
        for name in ("vmem_capacity_bytes", "vmem_size_bytes", "vmem_bytes"):
            v = getattr(info, name, None)
            if v:
                return int(v)
    except Exception:
        pass
    return 64 * 1024 * 1024   # assume the smaller (v7x-like) VMEM


def _pick_batch_block(nc, h, w, itemsize, target_bytes):
    """Number of (n, c) slices per grid step (block ~<= target_bytes)."""
    slab = max(h * w * itemsize, 1)
    b = int(max(1, min(nc, target_bytes // slab)))
    # Keep >= 2 grid steps so the "parallel" grid axis can shard across both
    # v7x TensorCores and DMA/compute pipelining has something to overlap.
    if b >= nc and nc >= 2:
        b = (nc + 1) // 2
    # Prefer a nearby divisor of nc (>= b//2): avoids the ragged-tail select at
    # the cost of at most 2x more grid steps.  Otherwise keep b and mask the
    # ragged last block in-kernel.
    if nc % b != 0:
        for cand in range(b, max(b // 2, 1) - 1, -1):
            if nc % cand == 0:
                return cand
    return b


def displacement_regularizer_2d(disp, energy_type="gradient-l2",
                                block_target_bytes=None, block_batch=None):
    """Pallas implementation of DisplacementRegularizer2D.forward.

    disp: (N, 2, H, W) displacement field (NCHW, same as the PyTorch module).
    """
    if energy_type not in ("gradient-l2", "gradient-l1", "bending"):
        raise Exception("Not recognised local regulariser!")

    n, c, h, w = disp.shape
    min_hw = 5 if energy_type == "bending" else 3
    if h < min_hw or w < min_hw:
        raise ValueError(
            f"{energy_type} regulariser needs spatial dims >= {min_hw}, got {(h, w)}")

    nc = n * c
    x = disp.reshape(nc, h, w)                 # native dtype, cast happens in-kernel

    # Generation-aware block target and scoped-VMEM limit.
    vmem_cap = _tpu_vmem_capacity_bytes()
    small_vmem = vmem_cap <= 64 * 1024 * 1024          # v7x-like
    if block_target_bytes is None:
        if energy_type == "bending" and small_vmem:
            block_target_bytes = 2 * 1024 * 1024       # more f32 temporaries
        else:
            block_target_bytes = 4 * 1024 * 1024
    vmem_limit = max(32 * 1024 * 1024,
                     min(vmem_cap * 3 // 4, 64 * 1024 * 1024))

    itemsize = jnp.dtype(disp.dtype).itemsize
    if block_batch is None:
        b = _pick_batch_block(nc, h, w, itemsize, block_target_bytes)
    else:
        b = int(max(1, min(nc, block_batch)))
    num_blocks = -(-nc // b)                   # ceil-div grid; last block may be ragged
    rem = nc - (num_blocks - 1) * b
    last_valid = None if rem == b else rem     # static: ragged mask compiled only if needed

    partials = pl.pallas_call(
        functools.partial(_energy_partial_kernel,
                          energy_type=energy_type, last_valid=last_valid),
        out_shape=jax.ShapeDtypeStruct((num_blocks, 1, w), jnp.float32),
        grid=(num_blocks,),
        in_specs=[pl.BlockSpec((b, h, w), lambda i: (i, 0, 0))],
        out_specs=pl.BlockSpec((1, 1, w), lambda i: (i, 0, 0)),
        compiler_params=pltpu.CompilerParams(
            dimension_semantics=("parallel",),     # per-block partials: no cross-step dep
            vmem_limit_bytes=vmem_limit),
    )(x)

    total = jnp.sum(partials)                  # final reduction in plain JAX

    # Fold the central-difference 1/2 factors (dropped in-kernel) into the mean.
    if energy_type == "gradient-l2":
        count = nc * (h - 2) * (w - 2)
        return total / (4.0 * count) / 2.0
    elif energy_type == "gradient-l1":
        count = nc * (h - 2) * (w - 2)
        return total / (2.0 * count) / 2.0
    else:  # bending
        count = nc * (h - 4) * (w - 4)
        return total / (16.0 * count)


def _reference(disp, energy_type="gradient-l2"):
    """Pure-JAX reference mirroring the PyTorch module (for verification)."""
    def gdx(fv):
        return (fv[:, 2:, 1:-1] - fv[:, :-2, 1:-1]) / 2.0

    def gdy(fv):
        return (fv[:, 1:-1, 2:] - fv[:, 1:-1, :-2]) / 2.0

    def gtxyz(t, fn):
        return jnp.stack([fn(t[:, i]) for i in (0, 1)], axis=1)

    dTdx = gtxyz(disp, gdx)
    dTdy = gtxyz(disp, gdy)
    if energy_type == "gradient-l2":
        return jnp.mean(dTdx ** 2 + dTdy ** 2) / 2.0
    if energy_type == "gradient-l1":
        return jnp.mean(jnp.abs(dTdx) + jnp.abs(dTdy)) / 2.0
    if energy_type == "bending":
        dTdxx = gtxyz(dTdx, gdx)
        dTdyy = gtxyz(dTdy, gdy)
        dTdxy = gtxyz(dTdx, gdy)
        return jnp.mean(dTdxx ** 2 + dTdyy ** 2 + 2.0 * dTdxy ** 2)
    raise Exception("Not recognised local regulariser!")


if __name__ == "__main__":
    k1, k2 = jax.random.split(jax.random.PRNGKey(0))

    # (N, 2, H, W) displacement field, NCHW like the PyTorch module.
    disp = jax.random.normal(k1, (2, 2, 64, 128), dtype=jnp.float32)
    # Second config exercises the ragged-last-block path (nc=14 with block_batch=5
    # -> 3 grid steps, last step has only 4 valid slices).
    disp_ragged = jax.random.normal(k2, (7, 2, 16, 128), dtype=jnp.float32)

    for et in ("gradient-l2", "gradient-l1", "bending"):
        out = jax.block_until_ready(
            displacement_regularizer_2d(disp, energy_type=et))
        ref = _reference(disp, energy_type=et)
        assert jnp.allclose(out, ref, rtol=1e-4, atol=1e-6), (et, out, ref)

        out_r = jax.block_until_ready(
            displacement_regularizer_2d(disp_ragged, energy_type=et, block_batch=5))
        ref_r = _reference(disp_ragged, energy_type=et)
        assert jnp.allclose(out_r, ref_r, rtol=1e-4, atol=1e-6), (et, out_r, ref_r)

    print("KERNEL_OK")
</pallas_src>

<mosaic_0001>
module attributes {stable_mosaic.version = 11 : i64} {
  func.func @_energy_partial_kernel(%arg0: i32, %arg1: memref<2x64x128xf32, #tpu.memory_space<vmem>>, %arg2: memref<1x1x128xf32, #tpu.memory_space<vmem>>) attributes {dimension_semantics = [#tpu.dimension_semantics<parallel>], iteration_bounds = array<i64: 2>, scalar_prefetch = 0 : i64, scratch_operands = 0 : i64, tpu.core_type = #tpu.core_type<tc>, window_params = [{transform_indices = @transform_0, window_bounds = array<i64: 2, 64, 128>}, {transform_indices = @transform_1, window_bounds = array<i64: 1, 1, 128>}]} {
    %c0 = arith.constant 0 : index
    %c0_0 = arith.constant 0 : index
    %c0_1 = arith.constant 0 : index
    %0 = vector.load %arg1[%c0, %c0_0, %c0_1] : memref<2x64x128xf32, #tpu.memory_space<vmem>>, vector<2x64x128xf32>
    %c63_i32 = arith.constant 63 : i32
    %1 = tpu.dynamic_rotate %0 by %c63_i32 dim 1 : vector<2x64x128xf32>, i32 -> vector<2x64x128xf32>
    %c1_i32 = arith.constant 1 : i32
    %2 = tpu.dynamic_rotate %0 by %c1_i32 dim 1 : vector<2x64x128xf32>, i32 -> vector<2x64x128xf32>
    %3 = arith.subf %1, %2 : vector<2x64x128xf32>
    %c127_i32 = arith.constant 127 : i32
    %4 = tpu.dynamic_rotate %0 by %c127_i32 dim 2 : vector<2x64x128xf32>, i32 -> vector<2x64x128xf32>
    %c1_i32_2 = arith.constant 1 : i32
    %5 = tpu.dynamic_rotate %0 by %c1_i32_2 dim 2 : vector<2x64x128xf32>, i32 -> vector<2x64x128xf32>
    %6 = arith.subf %4, %5 : vector<2x64x128xf32>
    %7 = arith.mulf %3, %3 : vector<2x64x128xf32>
    %8 = arith.mulf %6, %6 : vector<2x64x128xf32>
    %9 = arith.addf %7, %8 : vector<2x64x128xf32>
    %cst = arith.constant dense<0.000000e+00> : vector<64x128xf32>
    %10 = vector.multi_reduction <add>, %9, %cst [0] : vector<2x64x128xf32> to vector<64x128xf32>
    %11 = tpu.iota {dimensions = array<i32: 0>} : vector<64x128xi32>
    %c1_i32_3 = arith.constant 1 : i32
    %12 = vector.broadcast %c1_i32_3 : i32 to vector<64x128xi32>
    %13 = arith.cmpi sge, %11, %12 : vector<64x128xi32>
    %c62_i32 = arith.constant 62 : i32
    %14 = vector.broadcast %c62_i32 : i32 to vector<64x128xi32>
    %15 = arith.cmpi sle, %11, %14 : vector<64x128xi32>
    %16 = arith.andi %13, %15 : vector<64x128xi1>
    %cst_4 = arith.constant 0.000000e+00 : f32
    %17 = vector.broadcast %cst_4 : f32 to vector<64x128xf32>
    %18 = arith.select %16, %10, %17 : vector<64x128xi1>, vector<64x128xf32>
    %cst_5 = arith.constant dense<0.000000e+00> : vector<128xf32>
    %19 = vector.multi_reduction <add>, %18, %cst_5 [0] : vector<64x128xf32> to vector<128xf32>
    %20 = vector.shape_cast %19 : vector<128xf32> to vector<1x128xf32>
    %21 = tpu.iota {dimensions = array<i32: 1>} : vector<1x128xi32>
    %c1_i32_6 = arith.constant 1 : i32
    %22 = vector.broadcast %c1_i32_6 : i32 to vector<1x128xi32>
    %23 = arith.cmpi sge, %21, %22 : vector<1x128xi32>
    %c126_i32 = arith.constant 126 : i32
    %24 = vector.broadcast %c126_i32 : i32 to vector<1x128xi32>
    %25 = arith.cmpi sle, %21, %24 : vector<1x128xi32>
    %26 = arith.andi %23, %25 : vector<1x128xi1>
    %cst_7 = arith.constant 0.000000e+00 : f32
    %27 = vector.broadcast %cst_7 : f32 to vector<1x128xf32>
    %28 = arith.select %26, %20, %27 : vector<1x128xi1>, vector<1x128xf32>
    %c0_8 = arith.constant 0 : index
    %c0_9 = arith.constant 0 : index
    %c0_10 = arith.constant 0 : index
    %29 = vector.load %arg2[%c0_8, %c0_9, %c0_10] : memref<1x1x128xf32, #tpu.memory_space<vmem>>, vector<1x1x128xf32>
    %30 = vector.shape_cast %29 : vector<1x1x128xf32> to vector<1x128xf32>
    %31 = vector.shape_cast %28 : vector<1x128xf32> to vector<1x1x128xf32>
    tpu.vector_store %arg2[%c0_8, %c0_9, %c0_10], %31 {strides = array<i32>} : memref<1x1x128xf32, #tpu.memory_space<vmem>>, vector<1x1x128xf32>,
    return
  }
  func.func @transform_0(%arg0: i32) -> (i32, i32, i32) {
    %c0_i32 = arith.constant 0 : i32
    %c0_i32_0 = arith.constant 0 : i32
    %c0_i32_1 = arith.constant 0 : i32
    return %arg0, %c0_i32, %c0_i32_0 : i32, i32, i32
  }
  func.func @transform_1(%arg0: i32) -> (i32, i32, i32) {
    %c0_i32 = arith.constant 0 : i32
    %c0_i32_0 = arith.constant 0 : i32
    %c0_i32_1 = arith.constant 0 : i32
    return %arg0, %c0_i32, %c0_i32_0 : i32, i32, i32
  }
}

</mosaic_0001>

<llo_original>
// kernel: tpu_custom_call.1
$region0: #{tpu_custom_call.1}
  #allocation0 [shape = 'u32[]', space=smem, size = 0x4, offset = 0x4, fixed_abs, tag = 'smem constant byte address 0x4 - core index']
  #allocation1 [shape = 'u32[144,128]{1,0:T(1,128)}', space=vmem, size = 0x12000, scoped, tag = 'internal scratch']
  %s0 = inlined_call_operand.hbm [shape: f32[4,64,128], index: 0, kind: input, shape index: {}]
  %s1 = inlined_call_operand.hbm [shape: f32[2,1,128], index: 1, kind: output, shape index: {}]
  %s2 = sld [smem:[#allocation0]]
  $region41: #{tpu_custom_call.1} parent=0
    _
  %s4 = ssub.s32 1, %s2
  %s5 = scalar_select 0, %s4, %s2
  $region1: #{tpu_custom_call.1} parent=0
    #allocation2 [shape = 'u8[131072]{0}', space=vmem, size = 0x20000, scoped, tag = 'input window, operand 0']
    #allocation3 [shape = 's32[2]{0}', space=sflag, size = 0x8, scoped, tag = 'scoped memory for tpu_custom_call.1']
    #allocation4 [shape = 's32[2]{0}', space=sflag, size = 0x8, scoped, tag = 'scoped memory for tpu_custom_call.1']
    #allocation5 [shape = 'u8[1024]{0}', space=vmem, size = 0x400, scoped, tag = 'output window, operand 0']
    %6 = vsyncpa [#allocation3], 0
    %s7 = scalar_lea.sflag [#allocation3], 1
    %8 = vsyncpa %s7, 0
    %9 = vsyncpa [#allocation4], 0
    %s10 = scalar_lea.sflag [#allocation4], 1
    %11 = vsyncpa %s10, 0
    loop: start=0, step=1, limit=4
    $region2: #{tpu_custom_call.1} parent=1 // loop_pre_header
      _
    $region3: #{tpu_custom_call.1} parent=1 // loop_header
      %s13 = sphi 0, %s17
      %p14 = scmp.ge.s32.totalorder %s13, 4
      %s23 = sphi 0, %s25
      %s26 = sphi 0, %s23
      %s27 = sphi 0, %s26
      %s43 = sphi 0, %s27
      %s49 = sphi 0, %s51
      %s52 = sphi 0, %s49
      %s53 = sphi 0, %s52
      %s69 = sphi 0, %s53
    $region4: #{tpu_custom_call.1} parent=1 // loop_header_branch
      %16 = sbr.rel (%p14) target = $region8
    $region5: #{tpu_custom_call.1} parent=1 // loop_body
      %s18 = ssub.s32 %s13, 1
      %s19 = ssub.s32 %s13, 2
      %s20 = sadd.s32 %s13, 1
      %s21 = ssub.s32 %s13, %s20
      %p22 = scmp.eq.s32.totalorder %s21, 0
      %s24 = sadd.s32 %s23, 1
      %s25 = scalar_select %p22, %s23, %s24
      %p28 = pneg %p22
      %p29 = scmp.eq.s32.totalorder %s13, 1
      %p30 = por %p28, %p29
      %p31 = scmp.ne.s32.totalorder %s23, %s26
      %p32 = scmp.eq.s32.totalorder %s13, 0
      %p33 = por %p31, %p32
      %p34 = scmp.ne.s32.totalorder %s23, %s26
      %p35 = scmp.eq.s32.totalorder %s18, 1
      %p36 = por %p34, %p35
      %p37 = scmp.ne.s32.totalorder %s26, %s27
      %p38 = scmp.eq.s32.totalorder %s18, 0
      %p39 = por %p37, %p38
      %p40 = scmp.ne.s32.totalorder %s26, %s27
      %p41 = scmp.eq.s32.totalorder %s19, 1
      %p42 = por %p40, %p41
      %p44 = scmp.ne.s32.totalorder %s27, %s43
      %p45 = scmp.eq.s32.totalorder %s19, 0
      %p46 = por %p44, %p45
      %s47 = ssub.s32 %s13, %s20
      %p48 = scmp.eq.s32.totalorder %s47, 0
      %s50 = sadd.s32 %s49, 1
      %s51 = scalar_select %p48, %s49, %s50
      %p54 = pneg %p48
      %p55 = scmp.eq.s32.totalorder %s13, 1
      %p56 = por %p54, %p55
      %p57 = scmp.ne.s32.totalorder %s49, %s52
      %p58 = scmp.eq.s32.totalorder %s13, 0
      %p59 = por %p57, %p58
      %p60 = scmp.ne.s32.totalorder %s49, %s52
      %p61 = scmp.eq.s32.totalorder %s18, 1
      %p62 = por %p60, %p61
      %p63 = scmp.ne.s32.totalorder %s52, %s53
      %p64 = scmp.eq.s32.totalorder %s18, 0
      %p65 = por %p63, %p64
      %p66 = scmp.ne.s32.totalorder %s52, %s53
      %p67 = scmp.eq.s32.totalorder %s19, 1
      %p68 = por %p66, %p67
      %p70 = scmp.ne.s32.totalorder %s53, %s69
      %p71 = scmp.eq.s32.totalorder %s19, 0
      %p72 = por %p70, %p71
      %p73 = scmp.le.s32.totalorder 1, %s13
      %p74 = scmp.lt.s32.totalorder %s13, 3
      %p75 = pnand %p73, %p74
      %p76 = pneg %p75
      // Predicated region
      $region9: #{tpu_custom_call.1} parent=5 // pred_check
        _
      $region10: #{tpu_custom_call.1} parent=5 // pred_check_branch
        %78 = sbr.rel (%p75) target = $region12
      $region11: #{tpu_custom_call.1} parent=5 // pred_region
        %s79 = ssub.s32 %s13, 1
      $region12: #{tpu_custom_call.1} parent=5 // pred_fallthru
        _
      %p80 = scmp.lt.s32.totalorder %s13, 2
      // Predicated region
      $region13: #{tpu_custom_call.1} parent=5 // pred_check
        %p81 = pneg %p80
      $region14: #{tpu_custom_call.1} parent=5 // pred_check_branch
        %83 = sbr.rel (%p81) target = $region16
      $region15: #{tpu_custom_call.1} parent=5 // pred_region
        // Predicated region
        $region17: #{tpu_custom_call.1} parent=15 // pred_check
          %p84 = pneg %p33
        $region18: #{tpu_custom_call.1} parent=15 // pred_check_branch
          %86 = sbr.rel (%p84) target = $region20
        $region19: #{tpu_custom_call.1} parent=15 // pred_region
          %s87 = sand.u32 %s23, 1
          %s88 = scalar_lea.sflag [#allocation3], %s87
          %s89 = sand.u32 %s23, 1
          %s90 = smul.addr %s89, 128
          %s91 = scalar_lea.vmem [#allocation2], %s90
          %s92 = smul.u32 2, %s13
          %s94 = ssub.s32 2048, 2048
          %95 = vsyncadd %s88, %s94
          %s96 = smul.addr %s92, 8
          %s97 = smul.addr %s96, 128
          %s98 = scalar_lea.hbm %s0, %s97
          %s99 = sshll.u32 %s91, 4
          %s100 = int_to_ptr.vmem [resolvable:$true] %s99
          %105 = dma.hbm_to_vmem [thread:$0]  %s98, 2048, %s100, %s88, 128, 128, 8
        $region20: #{tpu_custom_call.1} parent=15 // pred_fallthru
          _
      $region16: #{tpu_custom_call.1} parent=5 // pred_fallthru
        _
      %p106 = scmp.le.s32.totalorder 1, %s13
      %p107 = scmp.lt.s32.totalorder %s13, 3
      %p108 = pnand %p106, %p107
      %p109 = pneg %p108
      // Predicated region
      $region21: #{tpu_custom_call.1} parent=5 // pred_check
        _
      $region22: #{tpu_custom_call.1} parent=5 // pred_check_branch
        %111 = sbr.rel (%p108) target = $region24
      $region23: #{tpu_custom_call.1} parent=5 // pred_region
        %s112 = ssub.s32 %s13, 1
        %s113 = sand.u32 %s26, 1
        %s114 = scalar_lea.sflag [#allocation3], %s113
        %s115 = sand.u32 %s26, 1
        %s116 = smul.addr %s115, 128
        %s117 = scalar_lea.vmem [#allocation2], %s116
        // Predicated region
        $region25: #{tpu_custom_call.1} parent=23 // pred_check
          %p118 = pneg %p39
        $region26: #{tpu_custom_call.1} parent=23 // pred_check_branch
          %120 = sbr.rel (%p118) target = $region28
        $region27: #{tpu_custom_call.1} parent=23 // pred_region
          %121 = dma.done %s114, 2048
        $region28: #{tpu_custom_call.1} parent=23 // pred_fallthru
          _
        %s122 = sand.u32 %s26, 1
        %s123 = scalar_lea.sflag [#allocation3], %s122
        %s124 = sand.u32 %s26, 1
        %s125 = smul.addr %s124, 128
        %s126 = scalar_lea.vmem [#allocation2], %s125
        %p127 = pneg %p39
        %p128 = pneg %p36
        %p129 = pneg %p65
        %p130 = pneg %p62
        %s131 = sand.u32 %s52, 1
        %s132 = scalar_lea.sflag [#allocation4], %s131
        %s133 = sand.u32 %s52, 1
        %s134 = scalar_lea.vmem [#allocation5], %s133
        %s135 = smul.u32 2, %s18
        %v136 = vld [vmem:[%s117] sm:$0xff]
        %v137 = vld [vmem:[%s117 + $0x8] sm:$0xff]
        %v138 = vld [vmem:[%s117 + $0x10] sm:$0xff]
        %v139 = vld [vmem:[%s117 + $0x18] sm:$0xff]
        %v140 = vld [vmem:[%s117 + $0x20] sm:$0xff]
        %v141 = vld [vmem:[%s117 + $0x28] sm:$0xff]
        %v142 = vld [vmem:[%s117 + $0x30] sm:$0xff]
        %v143 = vld [vmem:[%s117 + $0x38] sm:$0xff]
        %v144 = vld [vmem:[%s117 + $0x40] sm:$0xff]
        %v145 = vld [vmem:[%s117 + $0x48] sm:$0xff]
        %v146 = vld [vmem:[%s117 + $0x50] sm:$0xff]
        %v147 = vld [vmem:[%s117 + $0x58] sm:$0xff]
        %v148 = vld [vmem:[%s117 + $0x60] sm:$0xff]
        %v149 = vld [vmem:[%s117 + $0x68] sm:$0xff]
        %v150 = vld [vmem:[%s117 + $0x70] sm:$0xff]
        %v151 = vld [vmem:[%s117 + $0x78] sm:$0xff]
        %v152 = vrot.slane %v136, 1
        %v153 = vrot.slane %v144, 1
        %v154 = vrot.slane %v137, 1
        %v155 = vrot.slane %v145, 1
        %v156 = vrot.slane %v138, 1
        %v157 = vrot.slane %v146, 1
        %v158 = vrot.slane %v139, 1
        %v159 = vrot.slane %v147, 1
        %v160 = vrot.slane %v140, 1
        %v161 = vrot.slane %v148, 1
        %v162 = vrot.slane %v141, 1
        %v163 = vrot.slane %v149, 1
        %v164 = vrot.slane %v142, 1
        %v165 = vrot.slane %v150, 1
        %v166 = vrot.slane %v143, 1
        %v167 = vrot.slane %v151, 1
        %v168 = vlaneseq
        %v169 = vshrl.u32 %v168, 7
        %vm170 = vcmp.lt.s32.totalorder %v169, 7
        %v171 = vsel %vm170, %v164, %v166
        %v172 = vsel %vm170, %v165, %v167
        %v173 = vsel %vm170, %v162, %v164
        %v174 = vsel %vm170, %v163, %v165
        %v175 = vsel %vm170, %v160, %v162
        %v176 = vsel %vm170, %v161, %v163
        %v177 = vsel %vm170, %v158, %v160
        %v178 = vsel %vm170, %v159, %v161
        %v179 = vsel %vm170, %v156, %v158
        %v180 = vsel %vm170, %v157, %v159
        %v181 = vsel %vm170, %v154, %v156
        %v182 = vsel %vm170, %v155, %v157
        %v183 = vsel %vm170, %v152, %v154
        %v184 = vsel %vm170, %v153, %v155
        %v185 = vsel %vm170, %v166, %v152
        %v186 = vsel %vm170, %v167, %v153
        %v187 = vrot.slane %v136, 7
        %v188 = vrot.slane %v144, 7
        %v189 = vrot.slane %v137, 7
        %v190 = vrot.slane %v145, 7
        %v191 = vrot.slane %v138, 7
        %v192 = vrot.slane %v146, 7
        %v193 = vrot.slane %v139, 7
        %v194 = vrot.slane %v147, 7
        %v195 = vrot.slane %v140, 7
        %v196 = vrot.slane %v148, 7
        %v197 = vrot.slane %v141, 7
        %v198 = vrot.slane %v149, 7
        %v199 = vrot.slane %v142, 7
        %v200 = vrot.slane %v150, 7
        %v201 = vrot.slane %v143, 7
        %v202 = vrot.slane %v151, 7
        %vm203 = vcmp.lt.s32.totalorder %v169, 1
        %v204 = vsel %vm203, %v199, %v201
        %v205 = vsel %vm203, %v200, %v202
        %v206 = vsel %vm203, %v197, %v199
        %v207 = vsel %vm203, %v198, %v200
        %v208 = vsel %vm203, %v195, %v197
        %v209 = vsel %vm203, %v196, %v198
        %v210 = vsel %vm203, %v193, %v195
        %v211 = vsel %vm203, %v194, %v196
        %v212 = vsel %vm203, %v191, %v193
        %v213 = vsel %vm203, %v192, %v194
        %v214 = vsel %vm203, %v189, %v191
        %v215 = vsel %vm203, %v190, %v192
        %v216 = vsel %vm203, %v187, %v189
        %v217 = vsel %vm203, %v188, %v190
        %v218 = vsel %vm203, %v201, %v187
        %v219 = vsel %vm203, %v202, %v188
        %v220 = vsub.f32 %v183, %v218
        %v221 = vsub.f32 %v181, %v216
        %v222 = vsub.f32 %v179, %v214
        %v223 = vsub.f32 %v177, %v212
        %v224 = vsub.f32 %v175, %v210
        %v225 = vsub.f32 %v173, %v208
        %v226 = vsub.f32 %v171, %v206
        %v227 = vsub.f32 %v185, %v204
        %v228 = vsub.f32 %v184, %v219
        %v229 = vsub.f32 %v182, %v217
        %v230 = vsub.f32 %v180, %v215
        %v231 = vsub.f32 %v178, %v213
        %v232 = vsub.f32 %v176, %v211
        %v233 = vsub.f32 %v174, %v209
        %v234 = vsub.f32 %v172, %v207
        %v235 = vsub.f32 %v186, %v205
        %236 = vrot.lane.b32.xlu0 %v136, 127
        %v237 = vpop.permute.xlu0 %236
        %238 = vrot.lane.b32.xlu0 %v137, 127
        %v239 = vpop.permute.xlu0 %238
        %240 = vrot.lane.b32.xlu0 %v138, 127
        %v241 = vpop.permute.xlu0 %240
        %242 = vrot.lane.b32.xlu0 %v139, 127
        %v243 = vpop.permute.xlu0 %242
        %244 = vrot.lane.b32.xlu0 %v140, 127
        %v245 = vpop.permute.xlu0 %244
        %246 = vrot.lane.b32.xlu0 %v141, 127
        %v247 = vpop.permute.xlu0 %246
        %248 = vrot.lane.b32.xlu0 %v142, 127
        %v249 = vpop.permute.xlu0 %248
        %250 = vrot.lane.b32.xlu0 %v143, 127
        %v251 = vpop.permute.xlu0 %250
        %252 = vrot.lane.b32.xlu0 %v144, 127
        %v253 = vpop.permute.xlu0 %252
        %254 = vrot.lane.b32.xlu0 %v145, 127
        %v255 = vpop.permute.xlu0 %254
        %256 = vrot.lane.b32.xlu0 %v146, 127
        %v257 = vpop.permute.xlu0 %256
        %258 = vrot.lane.b32.xlu0 %v147, 127
        %v259 = vpop.permute.xlu0 %258
        %260 = vrot.lane.b32.xlu0 %v148, 127
        %v261 = vpop.permute.xlu0 %260
        %262 = vrot.lane.b32.xlu0 %v149, 127
        %v263 = vpop.permute.xlu0 %262
        %264 = vrot.lane.b32.xlu0 %v150, 127
        %v265 = vpop.permute.xlu0 %264
        %266 = vrot.lane.b32.xlu0 %v151, 127
        %v267 = vpop.permute.xlu0 %266
        %268 = vrot.lane.b32.xlu0 %v136, 1
        %v269 = vpop.permute.xlu0 %268
        %270 = vrot.lane.b32.xlu0 %v137, 1
        %v271 = vpop.permute.xlu0 %270
        %272 = vrot.lane.b32.xlu0 %v138, 1
        %v273 = vpop.permute.xlu0 %272
        %274 = vrot.lane.b32.xlu0 %v139, 1
        %v275 = vpop.permute.xlu0 %274
        %276 = vrot.lane.b32.xlu0 %v140, 1
        %v277 = vpop.permute.xlu0 %276
        %278 = vrot.lane.b32.xlu0 %v141, 1
        %v279 = vpop.permute.xlu0 %278
        %280 = vrot.lane.b32.xlu0 %v142, 1
        %v281 = vpop.permute.xlu0 %280
        %282 = vrot.lane.b32.xlu0 %v143, 1
        %v283 = vpop.permute.xlu0 %282
        %284 = vrot.lane.b32.xlu0 %v144, 1
        %v285 = vpop.permute.xlu0 %284
        %286 = vrot.lane.b32.xlu0 %v145, 1
        %v287 = vpop.permute.xlu0 %286
        %288 = vrot.lane.b32.xlu0 %v146, 1
        %v289 = vpop.permute.xlu0 %288
        %290 = vrot.lane.b32.xlu0 %v147, 1
        %v291 = vpop.permute.xlu0 %290
        %292 = vrot.lane.b32.xlu0 %v148, 1
        %v293 = vpop.permute.xlu0 %292
        %294 = vrot.lane.b32.xlu0 %v149, 1
        %v295 = vpop.permute.xlu0 %294
        %296 = vrot.lane.b32.xlu0 %v150, 1
        %v297 = vpop.permute.xlu0 %296
        %298 = vrot.lane.b32.xlu0 %v151, 1
        %v299 = vpop.permute.xlu0 %298
        %v300 = vsub.f32 %v237, %v269
        %v301 = vsub.f32 %v239, %v271
        %v302 = vsub.f32 %v241, %v273
        %v303 = vsub.f32 %v243, %v275
        %v304 = vsub.f32 %v245, %v277
        %v305 = vsub.f32 %v247, %v279
        %v306 = vsub.f32 %v249, %v281
        %v307 = vsub.f32 %v251, %v283
        %v308 = vsub.f32 %v253, %v285
        %v309 = vsub.f32 %v255, %v287
        %v310 = vsub.f32 %v257, %v289
        %v311 = vsub.f32 %v259, %v291
        %v312 = vsub.f32 %v261, %v293
        %v313 = vsub.f32 %v263, %v295
        %v314 = vsub.f32 %v265, %v297
        %v315 = vsub.f32 %v267, %v299
        %v316 = vmul.f32 %v220, %v220
        %v317 = vmul.f32 %v221, %v221
        %v318 = vmul.f32 %v222, %v222
        %v319 = vmul.f32 %v223, %v223
        %v320 = vmul.f32 %v224, %v224
        %v321 = vmul.f32 %v225, %v225
        %v322 = vmul.f32 %v226, %v226
        %v323 = vmul.f32 %v227, %v227
        %v324 = vmul.f32 %v228, %v228
        %v325 = vmul.f32 %v229, %v229
        %v326 = vmul.f32 %v230, %v230
        %v327 = vmul.f32 %v231, %v231
        %v328 = vmul.f32 %v232, %v232
        %v329 = vmul.f32 %v233, %v233
        %v330 = vmul.f32 %v234, %v234
        %v331 = vmul.f32 %v235, %v235
        %v332 = vmul.f32 %v300, %v300
        %v333 = vmul.f32 %v301, %v301
        %v334 = vmul.f32 %v302, %v302
        %v335 = vmul.f32 %v303, %v303
        %v336 = vmul.f32 %v304, %v304
        %v337 = vmul.f32 %v305, %v305
        %v338 = vmul.f32 %v306, %v306
        %v339 = vmul.f32 %v307, %v307
        %v340 = vmul.f32 %v308, %v308
        %v341 = vmul.f32 %v309, %v309
        %v342 = vmul.f32 %v310, %v310
        %v343 = vmul.f32 %v311, %v311
        %v344 = vmul.f32 %v312, %v312
        %v345 = vmul.f32 %v313, %v313
        %v346 = vmul.f32 %v314, %v314
        %v347 = vmul.f32 %v315, %v315
        %v348 = vadd.f32 %v316, %v332
        %v349 = vadd.f32 %v317, %v333
        %v350 = vadd.f32 %v318, %v334
        %v351 = vadd.f32 %v319, %v335
        %v352 = vadd.f32 %v320, %v336
        %v353 = vadd.f32 %v321, %v337
        %v354 = vadd.f32 %v322, %v338
        %v355 = vadd.f32 %v323, %v339
        %v356 = vadd.f32 %v324, %v340
        %v357 = vadd.f32 %v325, %v341
        %v358 = vadd.f32 %v326, %v342
        %v359 = vadd.f32 %v327, %v343
        %v360 = vadd.f32 %v328, %v344
        %v361 = vadd.f32 %v329, %v345
        %v362 = vadd.f32 %v330, %v346
        %v363 = vadd.f32 %v331, %v347
        %v364 = vadd.f32 %v348, %v356
        %v365 = vadd.f32 %v349, %v357
        %v366 = vadd.f32 %v350, %v358
        %v367 = vadd.f32 %v351, %v359
        %v368 = vadd.f32 %v352, %v360
        %v369 = vadd.f32 %v353, %v361
        %v370 = vadd.f32 %v354, %v362
        %v371 = vadd.f32 %v355, %v363
        %v372 = vadd.s32 %v169, 8
        %v373 = vadd.s32 %v169, 16
        %v374 = vadd.s32 %v169, 24
        %v375 = vadd.s32 %v169, 32
        %v376 = vadd.s32 %v169, 40
        %v377 = vadd.s32 %v169, 48
        %v378 = vadd.s32 %v169, 56
        %vm379 = vcmp.ge.s32.totalorder %v169, 1
        %vm380 = vcmp.ge.s32.totalorder %v372, 1
        %vm381 = vcmp.ge.s32.totalorder %v373, 1
        %vm382 = vcmp.ge.s32.totalorder %v374, 1
        %vm383 = vcmp.ge.s32.totalorder %v375, 1
        %vm384 = vcmp.ge.s32.totalorder %v376, 1
        %vm385 = vcmp.ge.s32.totalorder %v377, 1
        %vm386 = vcmp.ge.s32.totalorder %v378, 1
        %vm387 = vcmp.le.s32.totalorder %v169, 62
        %vm388 = vcmp.le.s32.totalorder %v372, 62
        %vm389 = vcmp.le.s32.totalorder %v373, 62
        %vm390 = vcmp.le.s32.totalorder %v374, 62
        %vm391 = vcmp.le.s32.totalorder %v375, 62
        %vm392 = vcmp.le.s32.totalorder %v376, 62
        %vm393 = vcmp.le.s32.totalorder %v377, 62
        %vm394 = vcmp.le.s32.totalorder %v378, 62
        %vm395 = vmand %vm379, %vm387
        %vm396 = vmand %vm380, %vm388
        %vm397 = vmand %vm381, %vm389
        %vm398 = vmand %vm382, %vm390
        %vm399 = vmand %vm383, %vm391
        %vm400 = vmand %vm384, %vm392
        %vm401 = vmand %vm385, %vm393
        %vm402 = vmand %vm386, %vm394
        %v403 = vsel %vm395, %v364, 0.0
        %v404 = vsel %vm396, %v365, 0.0
        %v405 = vsel %vm397, %v366, 0.0
        %v406 = vsel %vm398, %v367, 0.0
        %v407 = vsel %vm399, %v368, 0.0
        %v408 = vsel %vm400, %v369, 0.0
        %v409 = vsel %vm401, %v370, 0.0
        %v410 = vsel %vm402, %v371, 0.0
        %v411 = vadd.f32 %v403, %v404
        %v412 = vadd.f32 %v411, %v405
        %v413 = vadd.f32 %v412, %v406
        %v414 = vadd.f32 %v413, %v407
        %v415 = vadd.f32 %v414, %v408
        %v416 = vadd.f32 %v415, %v409
        %v417 = vadd.f32 %v416, %v410
        %v418 = vrot.slane %v417, 4
        %v419 = vadd.f32 %v417, %v418
        %v420 = vrot.slane %v419, 2
        %v421 = vadd.f32 %v419, %v420
        %v422 = vrot.slane %v421, 1
        %v423 = vadd.f32 %v421, %v422
        %v424 = vlaneseq
        %v425 = vand.u32 %v424, 127
        %vm426 = vcmp.ge.s32.totalorder %v425, 1
        %vm427 = vcmp.le.s32.totalorder %v425, 126
        %vm428 = vmand %vm426, %vm427
        %v429 = vsel %vm428, %v423, 0.0
        %430 = vst [vmem:[%s134] sm:$0x1] %v429
        %s431 = sand.u32 %s52, 1
        %s432 = scalar_lea.sflag [#allocation4], %s431
        %s433 = sand.u32 %s52, 1
        %s434 = scalar_lea.vmem [#allocation5], %s433
        // Predicated region
        $region29: #{tpu_custom_call.1} parent=23 // pred_check
          %p435 = pneg %p62
        $region30: #{tpu_custom_call.1} parent=23 // pred_check_branch
          %437 = sbr.rel (%p435) target = $region32
        $region31: #{tpu_custom_call.1} parent=23 // pred_region
          %s439 = ssub.s32 16, 16
          %440 = vsyncadd %s432, %s439
          %s441 = smul.addr %s18, 16
          %s442 = scalar_lea.hbm %s1, %s441
          %s444 = sshll.u32 %s434, 4
          %s445 = int_to_ptr.vmem [resolvable:$true] %s444
          %447 = dma.vmem_to_hbm [thread:$0]  %s445, 16, %s442, %s432
        $region32: #{tpu_custom_call.1} parent=23 // pred_fallthru
          _
      $region24: #{tpu_custom_call.1} parent=5 // pred_fallthru
        _
      %p448 = scmp.le.s32.totalorder 2, %s13
      // Predicated region
      $region33: #{tpu_custom_call.1} parent=5 // pred_check
        %p449 = pneg %p448
      $region34: #{tpu_custom_call.1} parent=5 // pred_check_branch
        %451 = sbr.rel (%p449) target = $region36
      $region35: #{tpu_custom_call.1} parent=5 // pred_region
        %s452 = ssub.s32 %s13, 2
        // Predicated region
        $region37: #{tpu_custom_call.1} parent=35 // pred_check
          %p453 = pneg %p68
        $region38: #{tpu_custom_call.1} parent=35 // pred_check_branch
          %455 = sbr.rel (%p453) target = $region40
        $region39: #{tpu_custom_call.1} parent=35 // pred_region
          %s456 = sand.u32 %s53, 1
          %s457 = scalar_lea.sflag [#allocation4], %s456
          %s458 = sand.u32 %s53, 1
          %s459 = scalar_lea.vmem [#allocation5], %s458
          %460 = dma.done %s457, 16
        $region40: #{tpu_custom_call.1} parent=35 // pred_fallthru
          _
      $region36: #{tpu_custom_call.1} parent=5 // pred_fallthru
        _
    $region6: #{tpu_custom_call.1} parent=1 // loop_footer
      %s17 = sadd.s32 1, %s13
    $region7: #{tpu_custom_call.1} parent=1 // loop_footer_branch
      %12 = sbr.rel target = $region3
    $region8: #{tpu_custom_call.1} parent=1 // loop_exit
      _
    %461 = vsyncpa [#allocation3], 1
    %s462 = scalar_lea.sflag [#allocation3], 1
    %463 = vsyncpa %s462, 1
    %464 = vsyncpa [#allocation4], 1
    %s465 = scalar_lea.sflag [#allocation4], 1
    %466 = vsyncpa %s465, 1

</llo_original>
